<compile_context>
chip_gen: v5e
topology: v5e:2x2
jax: 0.10.0
libtpu: 0.0.40
codegen_flags: <defaults>
</compile_context>

<pallas_src>
import functools

import jax
import jax.numpy as jnp
from jax.experimental import pallas as pl
from jax.experimental.pallas import tpu as pltpu


def _round_up(n: int, m: int) -> int:
    return ((n + m - 1) // m) * m


def mlp_kernel(x_ref, w_in_ref, b_in_ref, w_h_ref, b_h_ref,
               w_out_ref, b_out_ref, out_ref):
    # input layer: Linear (bf16 MXU, f32 acc) + ReLU
    h = jnp.dot(x_ref[...], w_in_ref[...], preferred_element_type=jnp.float32)
    h = jnp.maximum(h + b_in_ref[...], 0.0)

    # hidden layer: Linear + Dropout (identity at inference) + ReLU
    # TODO(synk): nn.Dropout(p>0, training mode) not implemented; would need
    #             pltpu.prng_seed + pltpu.prng_random_bits masking.
    h = jnp.dot(h.astype(jnp.bfloat16), w_h_ref[...],
                preferred_element_type=jnp.float32)
    h = jnp.maximum(h + b_h_ref[...], 0.0)

    # output layer (output_size == 1): N=1 matmul replaced by VPU multiply +
    # last-axis reduce against a (1, hidden) weight row (broadcast over batch).
    logits = jnp.sum(h * w_out_ref[...], axis=-1, keepdims=True) + b_out_ref[...]
    out_ref[...] = logits.astype(out_ref.dtype)


@functools.partial(jax.jit, static_argnames=("tile_b",))
def _forward_padded(x_bf16, w_in, b_in, w_h, b_h, w_out_row, b_out, *, tile_b):
    """x_bf16: (padded_batch, in) bf16, padded_batch % tile_b == 0."""
    padded_batch, in_size = x_bf16.shape
    hidden = w_in.shape[1]
    num_tiles = padded_batch // tile_b

    resident = lambda i: (0, 0)   # weights/biases: one block, resident across steps

    return pl.pallas_call(
        mlp_kernel,
        out_shape=jax.ShapeDtypeStruct((padded_batch, 1), jnp.float32),
        grid=(num_tiles,),
        in_specs=[
            pl.BlockSpec((tile_b, in_size), lambda i: (i, 0)),     # x tile
            pl.BlockSpec((in_size, hidden), resident),             # W_in (bf16)
            pl.BlockSpec((1, hidden), resident),                   # b_in (f32)
            pl.BlockSpec((hidden, hidden), resident),              # W_h  (bf16)
            pl.BlockSpec((1, hidden), resident),                   # b_h  (f32)
            pl.BlockSpec((1, hidden), resident),                   # W_out row (f32)
            pl.BlockSpec((1, 1), resident),                        # b_out (f32)
        ],
        out_specs=pl.BlockSpec((tile_b, 1), lambda i: (i, 0)),
        compiler_params=pltpu.CompilerParams(
            dimension_semantics=("parallel",),     # megacore on v7x
            vmem_limit_bytes=16 * 1024 * 1024,     # tiles are tiny; fits v5e/v6e/v7x
        ),
    )(x_bf16, w_in, b_in, w_h, b_h, w_out_row, b_out)


def neural_network_forward(x, params):
    """Fused MLP forward. x: (batch, input_size) f32. Returns (batch,) logits
    (0-D if batch == 1, matching PyTorch `.squeeze()`)."""
    (w_in, b_in), (w_h, b_h), (w_out, b_out) = params
    batch = x.shape[0]

    # Batch tile: big enough to amortize per-step overhead, small enough that
    # double-buffered tiles stay well inside v7x's 64 MiB VMEM (~1.2 KB/row f32).
    if batch <= 1024:
        tile_b = _round_up(batch, 8)
    else:
        tile_b = 1024
    padded_batch = _round_up(batch, tile_b)

    x_bf16 = x.astype(jnp.bfloat16)
    if padded_batch != batch:
        x_bf16 = jnp.pad(x_bf16, ((0, padded_batch - batch), (0, 0)))

    out = _forward_padded(
        x_bf16,
        w_in.astype(jnp.bfloat16), b_in.reshape(1, -1).astype(jnp.float32),
        w_h.astype(jnp.bfloat16), b_h.reshape(1, -1).astype(jnp.float32),
        w_out.reshape(1, -1).astype(jnp.float32),
        b_out.reshape(1, 1).astype(jnp.float32),
        tile_b=tile_b,
    )

    # drop padding rows; matches PyTorch `.squeeze()` for output_size == 1
    return jnp.squeeze(out[:batch])


def init_params(key, input_size, hidden_size, output_size):
    """Deterministic init mimicking nn.Linear's uniform(-1/sqrt(fan_in), ...).
    Weights are stored already transposed to (in, out)."""
    def linear(k, fan_in, fan_out):
        kw, kb = jax.random.split(k)
        bound = 1.0 / jnp.sqrt(fan_in)
        w = jax.random.uniform(kw, (fan_in, fan_out), jnp.float32, -bound, bound)
        b = jax.random.uniform(kb, (fan_out,), jnp.float32, -bound, bound)
        return w, b

    k1, k2, k3 = jax.random.split(key, 3)
    return (
        linear(k1, input_size, hidden_size),   # input_layer
        linear(k2, hidden_size, hidden_size),  # hidden_layers[0]
        linear(k3, hidden_size, output_size),  # output_layer
    )


def _reference(x, params):
    """Pure-JAX reference mirroring the kernel's bf16 quantization points."""
    (w_in, b_in), (w_h, b_h), (w_out, b_out) = params
    xb = x.astype(jnp.bfloat16)
    h = jnp.dot(xb, w_in.astype(jnp.bfloat16), preferred_element_type=jnp.float32)
    h = jnp.maximum(h + b_in, 0.0)
    h = jnp.dot(h.astype(jnp.bfloat16), w_h.astype(jnp.bfloat16),
                preferred_element_type=jnp.float32)
    h = jnp.maximum(h + b_h, 0.0)
    return jnp.squeeze(h @ w_out + b_out)


if __name__ == "__main__":
    key = jax.random.PRNGKey(0)
    k_x, k_p, k_x2 = jax.random.split(key, 3)

    batch, input_size, hidden_size, output_size = 8, 16, 64, 1

    x = jax.random.normal(k_x, (batch, input_size), jnp.float32)
    params = init_params(k_p, input_size, hidden_size, output_size)

    logits = neural_network_forward(x, params)
    jax.block_until_ready(logits)

    ref = _reference(x, params)
    assert logits.shape == (batch,)
    assert jnp.allclose(logits, ref, atol=1e-3, rtol=1e-3), (logits, ref)

    # Exercise the batch-padding path (batch not a multiple of 8).
    x2 = jax.random.normal(k_x2, (5, input_size), jnp.float32)
    logits2 = neural_network_forward(x2, params)
    jax.block_until_ready(logits2)
    ref2 = _reference(x2, params)
    assert logits2.shape == (5,)
    assert jnp.allclose(logits2, ref2, atol=1e-3, rtol=1e-3), (logits2, ref2)

    print("KERNEL_OK")
</pallas_src>

<mosaic_0001>
module attributes {stable_mosaic.version = 11 : i64} {
  func.func @mlp_kernel(%arg0: i32, %arg1: memref<8x16xbf16, #tpu.memory_space<vmem>>, %arg2: memref<16x64xbf16, #tpu.memory_space<vmem>>, %arg3: memref<1x64xf32, #tpu.memory_space<vmem>>, %arg4: memref<64x64xbf16, #tpu.memory_space<vmem>>, %arg5: memref<1x64xf32, #tpu.memory_space<vmem>>, %arg6: memref<1x64xf32, #tpu.memory_space<vmem>>, %arg7: memref<1x1xf32, #tpu.memory_space<vmem>>, %arg8: memref<8x1xf32, #tpu.memory_space<vmem>>) attributes {dimension_semantics = [#tpu.dimension_semantics<parallel>], iteration_bounds = array<i64: 1>, scalar_prefetch = 0 : i64, scratch_operands = 0 : i64, tpu.core_type = #tpu.core_type<tc>, window_params = [{transform_indices = @transform_0, window_bounds = array<i64: 8, 16>}, {pipeline_mode = #tpu.pipeline_mode<synchronous>, transform_indices = @transform_1, window_bounds = array<i64: 16, 64>}, {pipeline_mode = #tpu.pipeline_mode<synchronous>, transform_indices = @transform_2, window_bounds = array<i64: 1, 64>}, {pipeline_mode = #tpu.pipeline_mode<synchronous>, transform_indices = @transform_3, window_bounds = array<i64: 64, 64>}, {pipeline_mode = #tpu.pipeline_mode<synchronous>, transform_indices = @transform_4, window_bounds = array<i64: 1, 64>}, {pipeline_mode = #tpu.pipeline_mode<synchronous>, transform_indices = @transform_5, window_bounds = array<i64: 1, 64>}, {pipeline_mode = #tpu.pipeline_mode<synchronous>, transform_indices = @transform_6, window_bounds = array<i64: 1, 1>}, {transform_indices = @transform_7, window_bounds = array<i64: 8, 1>}]} {
    %c0 = arith.constant 0 : index
    %c0_0 = arith.constant 0 : index
    %0 = vector.load %arg1[%c0, %c0_0] : memref<8x16xbf16, #tpu.memory_space<vmem>>, vector<8x16xbf16>
    %c0_1 = arith.constant 0 : index
    %c0_2 = arith.constant 0 : index
    %1 = vector.load %arg2[%c0_1, %c0_2] : memref<16x64xbf16, #tpu.memory_space<vmem>>, vector<16x64xbf16>
    %cst = arith.constant dense<0.000000e+00> : vector<8x64xf32>
    %2 = tpu.matmul %0, %1, %cst {dimension_numbers = #tpu.dot_dimension_numbers<[1], [0], [0], [1], [0, 0, 1, 1], [], []>} : vector<8x16xbf16>, vector<16x64xbf16>, vector<8x64xf32> -> vector<8x64xf32>
    %c0_3 = arith.constant 0 : index
    %c0_4 = arith.constant 0 : index
    %3 = vector.load %arg3[%c0_3, %c0_4] : memref<1x64xf32, #tpu.memory_space<vmem>>, vector<1x64xf32>
    %4 = vector.broadcast %3 : vector<1x64xf32> to vector<8x64xf32>
    %5 = arith.addf %2, %4 : vector<8x64xf32>
    %cst_5 = arith.constant 0.000000e+00 : f32
    %6 = vector.broadcast %cst_5 : f32 to vector<8x64xf32>
    %7 = arith.maximumf %5, %6 : vector<8x64xf32>
    %8 = arith.truncf %7 : vector<8x64xf32> to vector<8x64xbf16>
    %c0_6 = arith.constant 0 : index
    %c0_7 = arith.constant 0 : index
    %9 = vector.load %arg4[%c0_6, %c0_7] : memref<64x64xbf16, #tpu.memory_space<vmem>>, vector<64x64xbf16>
    %cst_8 = arith.constant dense<0.000000e+00> : vector<8x64xf32>
    %10 = tpu.matmul %8, %9, %cst_8 {dimension_numbers = #tpu.dot_dimension_numbers<[1], [0], [0], [1], [0, 0, 1, 1], [], []>} : vector<8x64xbf16>, vector<64x64xbf16>, vector<8x64xf32> -> vector<8x64xf32>
    %c0_9 = arith.constant 0 : index
    %c0_10 = arith.constant 0 : index
    %11 = vector.load %arg5[%c0_9, %c0_10] : memref<1x64xf32, #tpu.memory_space<vmem>>, vector<1x64xf32>
    %12 = vector.broadcast %11 : vector<1x64xf32> to vector<8x64xf32>
    %13 = arith.addf %10, %12 : vector<8x64xf32>
    %cst_11 = arith.constant 0.000000e+00 : f32
    %14 = vector.broadcast %cst_11 : f32 to vector<8x64xf32>
    %15 = arith.maximumf %13, %14 : vector<8x64xf32>
    %c0_12 = arith.constant 0 : index
    %c0_13 = arith.constant 0 : index
    %16 = vector.load %arg6[%c0_12, %c0_13] : memref<1x64xf32, #tpu.memory_space<vmem>>, vector<1x64xf32>
    %17 = vector.broadcast %16 : vector<1x64xf32> to vector<8x64xf32>
    %18 = arith.mulf %15, %17 : vector<8x64xf32>
    %cst_14 = arith.constant dense<0.000000e+00> : vector<8xf32>
    %19 = vector.multi_reduction <add>, %18, %cst_14 [1] : vector<8x64xf32> to vector<8xf32>
    %20 = vector.shape_cast %19 : vector<8xf32> to vector<8x1xf32>
    %c0_15 = arith.constant 0 : index
    %c0_16 = arith.constant 0 : index
    %21 = vector.load %arg7[%c0_15, %c0_16] : memref<1x1xf32, #tpu.memory_space<vmem>>, vector<1x1xf32>
    %22 = vector.broadcast %21 : vector<1x1xf32> to vector<8x1xf32>
    %23 = arith.addf %20, %22 : vector<8x1xf32>
    %c0_17 = arith.constant 0 : index
    %c0_18 = arith.constant 0 : index
    %24 = vector.load %arg8[%c0_17, %c0_18] : memref<8x1xf32, #tpu.memory_space<vmem>>, vector<8x1xf32>
    tpu.vector_store %arg8[%c0_17, %c0_18], %23 {strides = array<i32>} : memref<8x1xf32, #tpu.memory_space<vmem>>, vector<8x1xf32>,
    return
  }
  func.func @transform_0(%arg0: i32) -> (i32, i32) {
    %c0_i32 = arith.constant 0 : i32
    %c0_i32_0 = arith.constant 0 : i32
    return %arg0, %c0_i32 : i32, i32
  }
  func.func @transform_1(%arg0: i32) -> (i32, i32) {
    %c0_i32 = arith.constant 0 : i32
    %c0_i32_0 = arith.constant 0 : i32
    %c0_i32_1 = arith.constant 0 : i32
    return %c0_i32, %c0_i32_0 : i32, i32
  }
  func.func @transform_2(%arg0: i32) -> (i32, i32) {
    %c0_i32 = arith.constant 0 : i32
    %c0_i32_0 = arith.constant 0 : i32
    %c0_i32_1 = arith.constant 0 : i32
    return %c0_i32, %c0_i32_0 : i32, i32
  }
  func.func @transform_3(%arg0: i32) -> (i32, i32) {
    %c0_i32 = arith.constant 0 : i32
    %c0_i32_0 = arith.constant 0 : i32
    %c0_i32_1 = arith.constant 0 : i32
    return %c0_i32, %c0_i32_0 : i32, i32
  }
  func.func @transform_4(%arg0: i32) -> (i32, i32) {
    %c0_i32 = arith.constant 0 : i32
    %c0_i32_0 = arith.constant 0 : i32
    %c0_i32_1 = arith.constant 0 : i32
    return %c0_i32, %c0_i32_0 : i32, i32
  }
  func.func @transform_5(%arg0: i32) -> (i32, i32) {
    %c0_i32 = arith.constant 0 : i32
    %c0_i32_0 = arith.constant 0 : i32
    %c0_i32_1 = arith.constant 0 : i32
    return %c0_i32, %c0_i32_0 : i32, i32
  }
  func.func @transform_6(%arg0: i32) -> (i32, i32) {
    %c0_i32 = arith.constant 0 : i32
    %c0_i32_0 = arith.constant 0 : i32
    %c0_i32_1 = arith.constant 0 : i32
    return %c0_i32, %c0_i32_0 : i32, i32
  }
  func.func @transform_7(%arg0: i32) -> (i32, i32) {
    %c0_i32 = arith.constant 0 : i32
    %c0_i32_0 = arith.constant 0 : i32
    return %arg0, %c0_i32 : i32, i32
  }
}

</mosaic_0001>

<llo_original>
// kernel: _forward_padded.1
$region0: #{_forward_padded.1}
  #allocation0 [shape = 'u32[]', space=smem, size = 0x4, offset = 0x4, fixed_abs, tag = 'smem constant byte address 0x4 - core index']
  #allocation1 [shape = 'u32[72,128]{1,0:T(1,128)}', space=vmem, size = 0x9000, scoped, tag = 'internal scratch']
  #allocation2 [shape = 'f32[1,1]{1,0:T(1,128)S(1)}', space=vmem, size = 0x200, scoped, tag = 'scoped memory for _forward_padded.1']
  %s0 = inlined_call_operand.hbm [shape: bf16[8,16], index: 0, kind: input, shape index: {}]
  %s1 = inlined_call_operand.hbm [shape: bf16[16,64], index: 1, kind: input, shape index: {}]
  %s2 = inlined_call_operand.vmem [shape: f32[1,64], index: 2, kind: input, shape index: {}]
  %s3 = inlined_call_operand.hbm [shape: bf16[64,64], index: 3, kind: input, shape index: {}]
  %s4 = inlined_call_operand.vmem [shape: f32[1,64], index: 4, kind: input, shape index: {}]
  %s5 = inlined_call_operand.vmem [shape: f32[1,64], index: 5, kind: input, shape index: {}]
  %s6 = inlined_call_operand.<no memory space> [shape: f32[1,1], index: 6, kind: input, shape index: {}]
  %s7 = inlined_call_operand.vmem [shape: f32[8,1], index: 7, kind: output, shape index: {}]
  %s8 = sld [smem:[#allocation0]]
  $region50: #{_forward_padded.1} parent=0
    _
  %s10 = ssub.s32 1, %s8
  %s11 = scalar_select 0, %s10, %s8
  %v12 = vstv %s6
  %13 = vst [vmem:[#allocation2] sm:$0x1] %v12
  $region1: #{_forward_padded.1} parent=0
    #allocation3 [shape = 'u8[2048]{0}', space=vmem, size = 0x800, scoped, tag = 'input window, operand 0, single buffered']
    #allocation4 [shape = 's32[1]{0}', space=sflag, size = 0x4, scoped, tag = 'scoped memory for _forward_padded.1']
    #allocation5 [shape = 'u8[4096]{0}', space=vmem, size = 0x1000, scoped, tag = 'input window, operand 1, single buffered']
    #allocation6 [shape = 's32[1]{0}', space=sflag, size = 0x4, scoped, tag = 'scoped memory for _forward_padded.1']
    #allocation7 [shape = 'u8[16384]{0}', space=vmem, size = 0x4000, scoped, tag = 'input window, operand 3, single buffered']
    %14 = vsyncpa [#allocation4], 0
    %15 = vsyncpa [#allocation6], 0
    // Predicated region
    $region2: #{_forward_padded.1} parent=1 // pred_check
      _
    $region3: #{_forward_padded.1} parent=1 // pred_check_branch
      %17 = sbr.rel (0) target = $region5
    $region4: #{_forward_padded.1} parent=1 // pred_region
      %19 = vsyncadd [#allocation4], 0
      %s21 = sshll.u32 %s0, 4
      %s22 = int_to_ptr.hbm [resolvable:$true] %s21
      %s23 = sshll.u32 [#allocation3], 4
      %s24 = int_to_ptr.vmem [resolvable:$true] %s23
      %26 = dma.hbm_to_vmem [thread:$0]  %s22, 64, %s24, [#allocation4]
    $region5: #{_forward_padded.1} parent=1 // pred_fallthru
      _
    // Predicated region
    $region6: #{_forward_padded.1} parent=1 // pred_check
      _
    $region7: #{_forward_padded.1} parent=1 // pred_check_branch
      %28 = sbr.rel (0) target = $region9
    $region8: #{_forward_padded.1} parent=1 // pred_region
      %30 = vsyncadd [#allocation6], 0
      %s31 = sshll.u32 %s1, 4
      %s32 = int_to_ptr.hbm [resolvable:$true] %s31
      %s33 = sshll.u32 [#allocation5], 4
      %s34 = int_to_ptr.vmem [resolvable:$true] %s33
      %39 = dma.hbm_to_vmem [thread:$0]  %s32, 128, %s34, [#allocation6], 64, 64, 4
    $region9: #{_forward_padded.1} parent=1 // pred_fallthru
      _
    // Predicated region
    $region10: #{_forward_padded.1} parent=1 // pred_check
      _
    $region11: #{_forward_padded.1} parent=1 // pred_check_branch
      %41 = sbr.rel (0) target = $region13
    $region12: #{_forward_padded.1} parent=1 // pred_region
      _
    $region13: #{_forward_padded.1} parent=1 // pred_fallthru
      _
    // Predicated region
    $region14: #{_forward_padded.1} parent=1 // pred_check
      _
    $region15: #{_forward_padded.1} parent=1 // pred_check_branch
      %43 = sbr.rel (0) target = $region17
    $region16: #{_forward_padded.1} parent=1 // pred_region
      %45 = vsyncadd [#allocation6], 0
      %s46 = sshll.u32 %s3, 4
      %s47 = int_to_ptr.hbm [resolvable:$true] %s46
      %s48 = sshll.u32 [#allocation7], 4
      %s49 = int_to_ptr.vmem [resolvable:$true] %s48
      %54 = dma.hbm_to_vmem [thread:$0]  %s47, 512, %s49, [#allocation6], 64, 64, 4
    $region17: #{_forward_padded.1} parent=1 // pred_fallthru
      _
    // Predicated region
    $region18: #{_forward_padded.1} parent=1 // pred_check
      _
    $region19: #{_forward_padded.1} parent=1 // pred_check_branch
      %56 = sbr.rel (0) target = $region21
    $region20: #{_forward_padded.1} parent=1 // pred_region
      _
    $region21: #{_forward_padded.1} parent=1 // pred_fallthru
      _
    // Predicated region
    $region22: #{_forward_padded.1} parent=1 // pred_check
      _
    $region23: #{_forward_padded.1} parent=1 // pred_check_branch
      %58 = sbr.rel (0) target = $region25
    $region24: #{_forward_padded.1} parent=1 // pred_region
      _
    $region25: #{_forward_padded.1} parent=1 // pred_fallthru
      _
    // Predicated region
    $region26: #{_forward_padded.1} parent=1 // pred_check
      _
    $region27: #{_forward_padded.1} parent=1 // pred_check_branch
      %60 = sbr.rel (0) target = $region29
    $region28: #{_forward_padded.1} parent=1 // pred_region
      _
    $region29: #{_forward_padded.1} parent=1 // pred_fallthru
      _
    // Predicated region
    $region30: #{_forward_padded.1} parent=1 // pred_check
      _
    $region31: #{_forward_padded.1} parent=1 // pred_check_branch
      %62 = sbr.rel (0) target = $region33
    $region32: #{_forward_padded.1} parent=1 // pred_region
      %64 = dma.done [#allocation4], 64
    $region33: #{_forward_padded.1} parent=1 // pred_fallthru
      _
    // Predicated region
    $region34: #{_forward_padded.1} parent=1 // pred_check
      _
    $region35: #{_forward_padded.1} parent=1 // pred_check_branch
      %66 = sbr.rel (0) target = $region37
    $region36: #{_forward_padded.1} parent=1 // pred_region
      %68 = dma.done [#allocation6], 128
    $region37: #{_forward_padded.1} parent=1 // pred_fallthru
      _
    // Predicated region
    $region38: #{_forward_padded.1} parent=1 // pred_check
      _
    $region39: #{_forward_padded.1} parent=1 // pred_check_branch
      %70 = sbr.rel (0) target = $region41
    $region40: #{_forward_padded.1} parent=1 // pred_region
      %72 = dma.done [#allocation6], 512
    $region41: #{_forward_padded.1} parent=1 // pred_fallthru
      _
    %v74 = vld [vmem:[#allocation3] sm:$0xf]
    %v75 = vld [vmem:[#allocation5] sm:$0xf]
    %v76 = vld [vmem:[#allocation5 + $0x4] sm:$0xf]
    %v77 = vld [vmem:[%s2] sm:$0x1]
    %v79 = vperm.slane %v77, 0
    %v83 = vunpack.c.l.b16 %v75
    %v84 = vunpack.c.l.b16 %v76
    %v85 = vpack.c.b16 %v84, %v83
    %vm87 = vcmask 130048
    %v89 = vsel %vm87, %v74, 0
    %91 = vmatpush.bf16.msra.mxu0 0
    %92 = vmatpush.bf16.msra.mxu0 0
    %93 = vmatpush.bf16.msra.mxu0 0
    %94 = vmatpush.bf16.msra.mxu0 0
    %95 = vmatpush.bf16.msra.mxu0 0
    %96 = vmatpush.bf16.msra.mxu0 0
    %97 = vmatpush.bf16.msra.mxu0 0
    %98 = vmatpush.bf16.msra.mxu0 %v85
    %99 = vmatmul.bf16.gmra.mxu0 %v89
    %v100 = vpop.f32.mrf.mxu0
    %v101 = vadd.f32 %v79, %v100
    %v102 = vpop.f32.mrf.mxu0
    %103 = vdwg.mxu0
    %v104 = vmax.f32 %v101, 0.0
    %v105 = vpack.c.bf16 %v104, %v104
    %v106 = vld [vmem:[#allocation7] sm:$0xf]
    %v107 = vld [vmem:[#allocation7 + $0x4] sm:$0xf]
    %v108 = vld [vmem:[#allocation7 + $0x8] sm:$0xf]
    %v109 = vld [vmem:[#allocation7 + $0xc] sm:$0xf]
    %v110 = vld [vmem:[#allocation7 + $0x10] sm:$0xf]
    %v111 = vld [vmem:[#allocation7 + $0x14] sm:$0xf]
    %v112 = vld [vmem:[#allocation7 + $0x18] sm:$0xf]
    %v113 = vld [vmem:[#allocation7 + $0x1c] sm:$0xf]
    %v114 = vld [vmem:[%s4] sm:$0x1]
    %v116 = vperm.slane %v114, 0
    %v126 = vunpack.c.l.b16 %v106
    %v127 = vunpack.c.l.b16 %v107
    %v128 = vunpack.c.l.b16 %v108
    %v129 = vunpack.c.l.b16 %v109
    %v130 = vunpack.c.l.b16 %v110
    %v131 = vunpack.c.l.b16 %v111
    %v132 = vunpack.c.l.b16 %v112
    %v133 = vunpack.c.l.b16 %v113
    %v134 = vpack.c.b16 %v127, %v126
    %v135 = vpack.c.b16 %v129, %v128
    %v136 = vpack.c.b16 %v131, %v130
    %v137 = vpack.c.b16 %v133, %v132
    %vm142 = vcmask 523264
    %v144 = vsel %vm142, %v105, 0
    %146 = vmatpush.bf16.msra.mxu0 0
    %147 = vmatpush.bf16.msra.mxu0 0
    %148 = vmatpush.bf16.msra.mxu0 0
    %149 = vmatpush.bf16.msra.mxu0 0
    %150 = vmatpush.bf16.msra.mxu0 %v137
    %151 = vmatpush.bf16.msra.mxu0 %v136
    %152 = vmatpush.bf16.msra.mxu0 %v135
    %153 = vmatpush.bf16.msra.mxu0 %v134
    %154 = vmatmul.bf16.gmra.mxu0 %v144
    %v155 = vpop.f32.mrf.mxu0
    %v156 = vadd.f32 %v116, %v155
    %v157 = vpop.f32.mrf.mxu0
    %158 = vdwg.mxu0
    %v159 = vmax.f32 %v156, 0.0
    %v160 = vld [vmem:[%s5] sm:$0x1]
    %v162 = vperm.slane %v160, 0
    %v164 = vmul.f32 %v159, %v162
    %v165 = vsel %vm142, %v164, 0.0
    %166 = vadd.xlane.f32.xlu0 %v165
    %v167 = vpop.xlane.xlu0 %166
    %v168 = vld [vmem:[#allocation2] sm:$0x1]
    %v170 = vperm.slane %v168, 0
    %v172 = vadd.f32 %v167, %v170
    %vm173 = vcmask 7168
    %174 = vst.msk [vmem:[%s7] sm:$0xff] %vm173, %v172
    // Predicated region
    $region42: #{_forward_padded.1} parent=1 // pred_check
      _
    $region43: #{_forward_padded.1} parent=1 // pred_check_branch
      %176 = sbr.rel (0) target = $region45
    $region44: #{_forward_padded.1} parent=1 // pred_region
      _
    $region45: #{_forward_padded.1} parent=1 // pred_fallthru
      _
    // Predicated region
    $region46: #{_forward_padded.1} parent=1 // pred_check
      _
    $region47: #{_forward_padded.1} parent=1 // pred_check_branch
      %178 = sbr.rel (0) target = $region49
    $region48: #{_forward_padded.1} parent=1 // pred_region
      _
    $region49: #{_forward_padded.1} parent=1 // pred_fallthru
      _
    %179 = vsyncpa [#allocation4], 1
    %180 = vsyncpa [#allocation6], 1

</llo_original>
